<compile_context>
chip_gen: v7x
topology: tpu7x:2x2x1
jax: 0.10.0
libtpu: 0.0.40
codegen_flags: <defaults>
</compile_context>

<pallas_src>
import jax
import jax.numpy as jnp
from jax import lax
from jax.experimental import pallas as pl
from jax.experimental.pallas import tpu as pltpu


def _round_up(n: int, m: int) -> int:
    return ((n + m - 1) // m) * m


def _physical_vmem_bytes() -> int:
    """Per-TensorCore physical VMEM; conservative fallback if the query is unavailable."""
    try:
        info = pltpu.get_tpu_info()
        vmem = getattr(info, "vmem_capacity_bytes", None)
        if vmem:
            return int(vmem)
    except Exception:
        pass
    return 64 * 2**20  # v7x per-TC size (safe lower bound for v5e/v6e too)


def _feedforward_kernel(x_ref, w1_ref, w2_ref, b2_ref, o_ref):
    # x_ref : (TM, Kp)  batch tile; K zero-padded to lanes, column K holds ones (bias fold)
    # w1_ref: (Hp, Kp)  fc1 weight with fc1 bias folded in as column K, resident
    # w2_ref: (8, Hp)   fc2 weight row in sublane 0, sublanes 1..7 zero, resident
    # b2_ref: (1, 1)    fc2 bias, SMEM scalar
    # o_ref : (1, TM)   sigmoid output, batch mapped to lanes (lane-dense stores)

    # Layer 1 on the MXU: h = W1_aug @ x_aug^T -> (Hp, TM), f32 accumulate (bias included).
    h = lax.dot_general(
        w1_ref[...], x_ref[...],
        dimension_numbers=(((1,), (1,)), ((), ())),
        preferred_element_type=jnp.float32,
    )
    h = jnp.maximum(h, 0.0)  # ReLU on the VPU (only remaining (Hp, TM)-sized VALU op)

    # Layer 2 also on the MXU: (8, Hp) @ (Hp, TM) -> (8, TM); row 0 = w2 @ h, rows 1..7
    # are exact zeros (zero weight rows).  Keeps the VALU slot free.
    logits = lax.dot_general(
        w2_ref[...], h,
        dimension_numbers=(((1,), (0,)), ((), ())),
        preferred_element_type=jnp.float32,
    )
    o_ref[...] = jax.nn.sigmoid(logits[0:1, :] + b2_ref[0, 0]).astype(o_ref.dtype)


def _choose_tm(batch, kp, hp, x_itemsize, w_itemsize, budget):
    """Largest batch tile fitting the per-generation VMEM budget; keeps the output
    lane-dense (TM >= 128) and the grid >= 2 steps when the batch is large enough."""
    b_cap = _round_up(max(batch, 1), 128)
    if b_cap <= 128:
        return 128  # lane-dense (1, 128) output; padded rows are sliced off in the wrapper
    tm = 128
    for t in (2048, 1024, 512, 256, 128):
        if t > b_cap:
            continue
        resident = 2 * hp * kp * w_itemsize + 2 * 8 * hp * 4      # W1 + w2 blocks (dbl-buf)
        stream = 2 * t * kp * x_itemsize + 2 * 8 * t * 4          # x tiles + out tiles
        activ = 2 * hp * t * 4                                    # h + layer-2 staging
        if resident + stream + activ <= budget:
            tm = t
            break
    if b_cap >= 256:
        # >= 2 grid steps so the "parallel" axis can shard across both v7x TensorCores.
        tm = max(128, min(tm, (b_cap // 2) // 128 * 128))
    return tm


def prepare_params(w1, b1, w2, b2, *, use_bf16_matmul=False):
    """One-time weight preparation (pad, fold fc1 bias, cast).  Cache and reuse the result
    across forward calls so the hot path touches only x and the output.

    w1: (H, K) fc1.weight (torch layout), b1: (H,), w2: (1, H), b2: (1,)
    """
    H, K = w1.shape
    assert b1.shape == (H,) and w2.shape == (1, H) and b2.shape == (1,)
    Hp = _round_up(H, 128)
    Kp = _round_up(K + 1, 128)  # +1 lane for the folded fc1 bias (ones column in x)

    w1f = jnp.concatenate(
        [w1.astype(jnp.float32), b1.astype(jnp.float32).reshape(H, 1)], axis=1)  # (H, K+1)
    w1_aug = jnp.pad(w1f, ((0, Hp - H), (0, Kp - (K + 1))))                       # (Hp, Kp)
    if use_bf16_matmul:
        # MXU throughput / DMA lever on all generations; f32 accumulate in-kernel.
        w1_aug = w1_aug.astype(jnp.bfloat16)

    w2_blk = jnp.zeros((8, Hp), jnp.float32).at[0, :H].set(w2.astype(jnp.float32)[0])
    b2s = b2.astype(jnp.float32).reshape(1, 1)
    return w1_aug, w2_blk, b2s


def feedforward_apply(x, w1_aug, w2_blk, b2s):
    """Forward pass given prepared params.  x: (B, K) float32 -> (B, 1) float32."""
    B, K = x.shape
    Hp, Kp = w1_aug.shape
    assert K + 1 <= Kp and w2_blk.shape == (8, Hp) and b2s.shape == (1, 1)

    x_dtype = w1_aug.dtype  # match the layer-1 MXU operand dtype (f32 or bf16)
    x_isz = jnp.dtype(x_dtype).itemsize
    w_isz = jnp.dtype(w1_aug.dtype).itemsize

    phys_vmem = _physical_vmem_bytes()
    budget = min(max(int(phys_vmem * 0.4), 24 * 2**20), 96 * 2**20)
    TM = _choose_tm(B, Kp, Hp, x_isz, w_isz, budget)
    B_pad = _round_up(B, TM)

    # Augment x: ones column at lane K (bias fold), zero-pad K and the batch.
    x_aug = jnp.concatenate([x.astype(x_dtype), jnp.ones((B, 1), x_dtype)], axis=1)
    x_aug = jnp.pad(x_aug, ((0, B_pad - B), (0, Kp - (K + 1))))

    resident = 2 * Hp * Kp * w_isz + 2 * 8 * Hp * 4
    stream = 2 * TM * Kp * x_isz + 2 * 8 * TM * 4
    activ = 2 * Hp * TM * 4
    vmem_est = resident + stream + activ
    vmem_limit = int(min(max(2 * vmem_est, 32 * 2**20), int(phys_vmem * 0.9)))

    out_row = pl.pallas_call(
        _feedforward_kernel,
        out_shape=jax.ShapeDtypeStruct((1, B_pad), jnp.float32),
        grid=(B_pad // TM,),
        in_specs=[
            pl.BlockSpec((TM, Kp), lambda i: (i, 0)),            # x: streamed over batch
            pl.BlockSpec((Hp, Kp), lambda i: (0, 0)),            # W1 (+ folded b1): resident
            pl.BlockSpec((8, Hp), lambda i: (0, 0)),             # W2 block: resident
            pl.BlockSpec(memory_space=pltpu.MemorySpace.SMEM),   # b2: scalar in SMEM
        ],
        out_specs=pl.BlockSpec((1, TM), lambda i: (0, i)),
        compiler_params=pltpu.CompilerParams(
            dimension_semantics=("parallel",),   # batch tiles shard across TCs on v7x
            vmem_limit_bytes=vmem_limit,
        ),
    )(x_aug, w1_aug, w2_blk, b2s)

    # Lane-dense (1, B_pad) row back to the module's (B, 1) column; drop batch padding.
    return out_row[0, :B].reshape(B, 1)


def feedforward(x, w1, b1, w2, b2, *, use_bf16_matmul=False):
    """Convenience wrapper matching the PyTorch module (prep + apply in one call).
    For hot loops, call prepare_params() once and reuse with feedforward_apply()."""
    params = prepare_params(w1, b1, w2, b2, use_bf16_matmul=use_bf16_matmul)
    return feedforward_apply(x, *params)


def init_params(key, input_size, hidden_size):
    """torch.nn.Linear default init (U(-1/sqrt(fan_in), 1/sqrt(fan_in))), torch layouts."""
    k1, k2, k3, k4 = jax.random.split(key, 4)
    bound1 = 1.0 / (input_size ** 0.5)
    bound2 = 1.0 / (hidden_size ** 0.5)
    w1 = jax.random.uniform(k1, (hidden_size, input_size), jnp.float32, -bound1, bound1)
    b1 = jax.random.uniform(k2, (hidden_size,), jnp.float32, -bound1, bound1)
    w2 = jax.random.uniform(k3, (1, hidden_size), jnp.float32, -bound2, bound2)
    b2 = jax.random.uniform(k4, (1,), jnp.float32, -bound2, bound2)
    return w1, b1, w2, b2


def _reference(x, w1, b1, w2, b2):
    h = jnp.maximum(x @ w1.T + b1, 0.0)
    return jax.nn.sigmoid(h @ w2.T + b2)


if __name__ == "__main__":
    key = jax.random.PRNGKey(0)
    batch, input_size, hidden_size = 8, 16, 32

    kx, kp = jax.random.split(key)
    x = jax.random.normal(kx, (batch, input_size), jnp.float32)
    w1, b1, w2, b2 = init_params(kp, input_size, hidden_size)

    # Weight prep hoisted out of the hot path: done once, reused across calls.
    params_f32 = prepare_params(w1, b1, w2, b2)
    apply = jax.jit(feedforward_apply)

    # f32 path
    out = jax.block_until_ready(apply(x, *params_f32))
    ref = _reference(x, w1, b1, w2, b2)
    assert out.shape == (batch, 1)
    assert jnp.allclose(out, ref, atol=1e-5, rtol=1e-5)

    # bf16 MXU path (usable on all TPU generations) -- looser tolerance.
    params_bf16 = prepare_params(w1, b1, w2, b2, use_bf16_matmul=True)
    out_bf16 = jax.block_until_ready(apply(x, *params_bf16))
    assert jnp.allclose(out_bf16, ref, atol=2e-2, rtol=2e-2)

    # Larger batch exercises the multi-step grid (>= 2 tiles) and batch padding.
    xb = jax.random.normal(jax.random.PRNGKey(1), (300, input_size), jnp.float32)
    outb = jax.block_until_ready(apply(xb, *params_f32))
    assert jnp.allclose(outb, _reference(xb, w1, b1, w2, b2), atol=1e-5, rtol=1e-5)

    print("KERNEL_OK")
</pallas_src>

<mosaic_0001>
module attributes {stable_mosaic.version = 11 : i64} {
  func.func @_feedforward_kernel(%arg0: i32, %arg1: memref<128x128xf32, #tpu.memory_space<vmem>>, %arg2: memref<128x128xf32, #tpu.memory_space<vmem>>, %arg3: memref<8x128xf32, #tpu.memory_space<vmem>>, %arg4: memref<1x1xf32, #tpu.memory_space<smem>>, %arg5: memref<1x128xf32, #tpu.memory_space<vmem>>) attributes {dimension_semantics = [#tpu.dimension_semantics<parallel>], iteration_bounds = array<i64: 1>, scalar_prefetch = 0 : i64, scratch_operands = 0 : i64, tpu.core_type = #tpu.core_type<tc>, window_params = [{transform_indices = @transform_0, window_bounds = array<i64: 128, 128>}, {pipeline_mode = #tpu.pipeline_mode<synchronous>, transform_indices = @transform_1, window_bounds = array<i64: 128, 128>}, {pipeline_mode = #tpu.pipeline_mode<synchronous>, transform_indices = @transform_2, window_bounds = array<i64: 8, 128>}, {transform_indices = @transform_3, window_bounds = array<i64: 1, 1>}, {transform_indices = @transform_4, window_bounds = array<i64: 1, 128>}]} {
    %c0 = arith.constant 0 : index
    %c0_0 = arith.constant 0 : index
    %0 = vector.load %arg2[%c0, %c0_0] : memref<128x128xf32, #tpu.memory_space<vmem>>, vector<128x128xf32>
    %c0_1 = arith.constant 0 : index
    %c0_2 = arith.constant 0 : index
    %1 = vector.load %arg1[%c0_1, %c0_2] : memref<128x128xf32, #tpu.memory_space<vmem>>, vector<128x128xf32>
    %cst = arith.constant dense<0.000000e+00> : vector<128x128xf32>
    %2 = tpu.matmul %0, %1, %cst {dimension_numbers = #tpu.dot_dimension_numbers<[1], [1], [0], [0], [0, 0, 1, 0], [], []>} : vector<128x128xf32>, vector<128x128xf32>, vector<128x128xf32> -> vector<128x128xf32>
    %cst_3 = arith.constant 0.000000e+00 : f32
    %3 = vector.broadcast %cst_3 : f32 to vector<128x128xf32>
    %4 = arith.maximumf %2, %3 : vector<128x128xf32>
    %c0_4 = arith.constant 0 : index
    %c0_5 = arith.constant 0 : index
    %5 = vector.load %arg3[%c0_4, %c0_5] : memref<8x128xf32, #tpu.memory_space<vmem>>, vector<8x128xf32>
    %cst_6 = arith.constant dense<0.000000e+00> : vector<8x128xf32>
    %6 = tpu.matmul %5, %4, %cst_6 {dimension_numbers = #tpu.dot_dimension_numbers<[1], [0], [0], [1], [0, 0, 1, 1], [], []>} : vector<8x128xf32>, vector<128x128xf32>, vector<8x128xf32> -> vector<8x128xf32>
    %7 = vector.extract_strided_slice %6 {offsets = [0, 0], sizes = [1, 128], strides = [1, 1]} : vector<8x128xf32> to vector<1x128xf32>
    %c0_7 = arith.constant 0 : index
    %c0_8 = arith.constant 0 : index
    %8 = memref.load %arg4[%c0_7, %c0_8] : memref<1x1xf32, #tpu.memory_space<smem>>
    %9 = vector.broadcast %8 : f32 to vector<1x128xf32>
    %10 = arith.addf %7, %9 : vector<1x128xf32>
    %11 = arith.negf %10 : vector<1x128xf32>
    %12 = math.exp %11 : vector<1x128xf32>
    %cst_9 = arith.constant 1.000000e+00 : f32
    %13 = vector.broadcast %cst_9 : f32 to vector<1x128xf32>
    %14 = arith.addf %13, %12 : vector<1x128xf32>
    %15 = arith.divf %13, %14 : vector<1x128xf32>
    %c0_10 = arith.constant 0 : index
    %c0_11 = arith.constant 0 : index
    %16 = vector.load %arg5[%c0_10, %c0_11] : memref<1x128xf32, #tpu.memory_space<vmem>>, vector<1x128xf32>
    tpu.vector_store %arg5[%c0_10, %c0_11], %15 {strides = array<i32>} : memref<1x128xf32, #tpu.memory_space<vmem>>, vector<1x128xf32>,
    return
  }
  func.func @transform_0(%arg0: i32) -> (i32, i32) {
    %c0_i32 = arith.constant 0 : i32
    %c0_i32_0 = arith.constant 0 : i32
    return %arg0, %c0_i32 : i32, i32
  }
  func.func @transform_1(%arg0: i32) -> (i32, i32) {
    %c0_i32 = arith.constant 0 : i32
    %c0_i32_0 = arith.constant 0 : i32
    %c0_i32_1 = arith.constant 0 : i32
    return %c0_i32, %c0_i32_0 : i32, i32
  }
  func.func @transform_2(%arg0: i32) -> (i32, i32) {
    %c0_i32 = arith.constant 0 : i32
    %c0_i32_0 = arith.constant 0 : i32
    %c0_i32_1 = arith.constant 0 : i32
    return %c0_i32, %c0_i32_0 : i32, i32
  }
  func.func @transform_3(%arg0: i32) -> (i32, i32) {
    %c0_i32 = arith.constant 0 : i32
    %c0_i32_0 = arith.constant 0 : i32
    %c0_i32_1 = arith.constant 0 : i32
    return %c0_i32, %c0_i32_0 : i32, i32
  }
  func.func @transform_4(%arg0: i32) -> (i32, i32) {
    %c0_i32 = arith.constant 0 : i32
    %c0_i32_0 = arith.constant 0 : i32
    return %c0_i32, %arg0 : i32, i32
  }
}

</mosaic_0001>

<llo_original>
// kernel: feedforward_apply.1
$region0: #{feedforward_apply.1}
  #allocation0 [shape = 'u32[]', space=smem, size = 0x4, offset = 0x4, fixed_abs, tag = 'smem constant byte address 0x4 - core index']
  #allocation1 [shape = 'u32[144,128]{1,0:T(1,128)}', space=vmem, size = 0x12000, scoped, tag = 'internal scratch']
  #allocation2 [shape = 'f32[1,1]{1,0:T(1,128)S(6)}', space=smem, size = 0x200, scoped, tag = 'scoped memory for feedforward_apply.1']
  %s0 = inlined_call_operand.vmem [shape: f32[128,128], index: 0, kind: input, shape index: {}]
  %s1 = inlined_call_operand.vmem [shape: f32[128,128], index: 1, kind: input, shape index: {}]
  %s2 = inlined_call_operand.vmem [shape: f32[8,128], index: 2, kind: input, shape index: {}]
  %s3 = inlined_call_operand.<no memory space> [shape: f32[1,1], index: 3, kind: input, shape index: {}]
  %s4 = inlined_call_operand.vmem [shape: f32[1,128], index: 4, kind: output, shape index: {}]
  %s5 = sld [smem:[#allocation0]]
  $region26: #{feedforward_apply.1} parent=0
    _
  %s7 = ssub.s32 1, %s5
  %s8 = scalar_select 0, %s7, %s5
  %9 = sst [smem:[#allocation2]] %s3
  // Predicated region
  $region2: #{feedforward_apply.1} parent=0 // pred_check
    _
  $region3: #{feedforward_apply.1} parent=0 // pred_check_branch
    %11 = sbr.rel (0) target = $region5
  $region4: #{feedforward_apply.1} parent=0 // pred_region
    _
  $region5: #{feedforward_apply.1} parent=0 // pred_fallthru
    _
  // Predicated region
  $region6: #{feedforward_apply.1} parent=0 // pred_check
    _
  $region7: #{feedforward_apply.1} parent=0 // pred_check_branch
    %13 = sbr.rel (0) target = $region9
  $region8: #{feedforward_apply.1} parent=0 // pred_region
    _
  $region9: #{feedforward_apply.1} parent=0 // pred_fallthru
    _
  // Predicated region
  $region10: #{feedforward_apply.1} parent=0 // pred_check
    _
  $region11: #{feedforward_apply.1} parent=0 // pred_check_branch
    %15 = sbr.rel (0) target = $region13
  $region12: #{feedforward_apply.1} parent=0 // pred_region
    _
  $region13: #{feedforward_apply.1} parent=0 // pred_fallthru
    _
  // Predicated region
  $region14: #{feedforward_apply.1} parent=0 // pred_check
    _
  $region15: #{feedforward_apply.1} parent=0 // pred_check_branch
    %17 = sbr.rel (0) target = $region17
  $region16: #{feedforward_apply.1} parent=0 // pred_region
    _
  $region17: #{feedforward_apply.1} parent=0 // pred_fallthru
    _
  %v18 = vld [vmem:[%s1] sm:$0xff]
  %v19 = vld [vmem:[%s1 + $0x8] sm:$0xff]
  %v20 = vld [vmem:[%s1 + $0x10] sm:$0xff]
  %v21 = vld [vmem:[%s1 + $0x18] sm:$0xff]
  %v22 = vld [vmem:[%s1 + $0x20] sm:$0xff]
  %v23 = vld [vmem:[%s1 + $0x28] sm:$0xff]
  %v24 = vld [vmem:[%s1 + $0x30] sm:$0xff]
  %v25 = vld [vmem:[%s1 + $0x38] sm:$0xff]
  %v26 = vld [vmem:[%s1 + $0x40] sm:$0xff]
  %v27 = vld [vmem:[%s1 + $0x48] sm:$0xff]
  %v28 = vld [vmem:[%s1 + $0x50] sm:$0xff]
  %v29 = vld [vmem:[%s1 + $0x58] sm:$0xff]
  %v30 = vld [vmem:[%s1 + $0x60] sm:$0xff]
  %v31 = vld [vmem:[%s1 + $0x68] sm:$0xff]
  %v32 = vld [vmem:[%s1 + $0x70] sm:$0xff]
  %v33 = vld [vmem:[%s1 + $0x78] sm:$0xff]
  %v34 = vld [vmem:[%s0] sm:$0xff]
  %v35 = vld [vmem:[%s0 + $0x8] sm:$0xff]
  %v36 = vld [vmem:[%s0 + $0x10] sm:$0xff]
  %v37 = vld [vmem:[%s0 + $0x18] sm:$0xff]
  %v38 = vld [vmem:[%s0 + $0x20] sm:$0xff]
  %v39 = vld [vmem:[%s0 + $0x28] sm:$0xff]
  %v40 = vld [vmem:[%s0 + $0x30] sm:$0xff]
  %v41 = vld [vmem:[%s0 + $0x38] sm:$0xff]
  %v42 = vld [vmem:[%s0 + $0x40] sm:$0xff]
  %v43 = vld [vmem:[%s0 + $0x48] sm:$0xff]
  %v44 = vld [vmem:[%s0 + $0x50] sm:$0xff]
  %v45 = vld [vmem:[%s0 + $0x58] sm:$0xff]
  %v46 = vld [vmem:[%s0 + $0x60] sm:$0xff]
  %v47 = vld [vmem:[%s0 + $0x68] sm:$0xff]
  %v48 = vld [vmem:[%s0 + $0x70] sm:$0xff]
  %v49 = vld [vmem:[%s0 + $0x78] sm:$0xff]
  %50 = vmatprep.subr.mxu0 0.0
  %51 = vmatpush1.xpose.msra.mxu0 %v34
  %52 = vmatprep.subr.mxu0 0.0
  %53 = vmatpush1.xpose.msra.mxu0 %v35
  %54 = vmatprep.subr.mxu0 0.0
  %55 = vmatpush1.xpose.msra.mxu0 %v36
  %56 = vmatprep.subr.mxu0 0.0
  %57 = vmatpush1.xpose.msra.mxu0 %v37
  %58 = vmatprep.subr.mxu0 0.0
  %59 = vmatpush1.xpose.msra.mxu0 %v38
  %60 = vmatprep.subr.mxu0 0.0
  %61 = vmatpush1.xpose.msra.mxu0 %v39
  %62 = vmatprep.subr.mxu0 0.0
  %63 = vmatpush1.xpose.msra.mxu0 %v40
  %64 = vmatprep.subr.mxu0 0.0
  %65 = vmatpush1.xpose.msra.mxu0 %v41
  %66 = vmatprep.subr.mxu0 0.0
  %67 = vmatpush1.xpose.msra.mxu0 %v42
  %68 = vmatprep.subr.mxu0 0.0
  %69 = vmatpush1.xpose.msra.mxu0 %v43
  %70 = vmatprep.subr.mxu0 0.0
  %71 = vmatpush1.xpose.msra.mxu0 %v44
  %72 = vmatprep.subr.mxu0 0.0
  %73 = vmatpush1.xpose.msra.mxu0 %v45
  %74 = vmatprep.subr.mxu0 0.0
  %75 = vmatpush1.xpose.msra.mxu0 %v46
  %76 = vmatprep.subr.mxu0 0.0
  %77 = vmatpush1.xpose.msra.mxu0 %v47
  %78 = vmatprep.subr.mxu0 0.0
  %79 = vmatpush1.xpose.msra.mxu0 %v48
  %80 = vmatprep.subr.mxu0 0.0
  %81 = vmatpush1.xpose.msra.mxu0 %v49
  %82 = vmatprep.subr.mxu0 0.0
  %83 = vmatpush1.xpose.msra.mxu0 0.0
  %84 = vmatprep.subr.mxu0 0.0
  %85 = vmatpush1.xpose.msra.mxu0 0.0
  %86 = vmatprep.subr.mxu0 0.0
  %87 = vmatpush1.xpose.msra.mxu0 0.0
  %88 = vmatprep.subr.mxu0 0.0
  %89 = vmatpush1.xpose.msra.mxu0 0.0
  %90 = vmatprep.subr.mxu0 0.0
  %91 = vmatpush1.xpose.msra.mxu0 0.0
  %92 = vmatprep.subr.mxu0 0.0
  %93 = vmatpush1.xpose.msra.mxu0 0.0
  %94 = vmatprep.subr.mxu0 0.0
  %95 = vmatpush1.xpose.msra.mxu0 0.0
  %96 = vmatprep.subr.mxu0 0.0
  %97 = vmatpush1.xpose.msra.mxu0 0.0
  %98 = vmatprep.subr.mxu0 0.0
  %99 = vmatpush1.xpose.msra.mxu0 0.0
  %100 = vmatprep.subr.mxu0 0.0
  %101 = vmatpush1.xpose.msra.mxu0 0.0
  %102 = vmatprep.subr.mxu0 0.0
  %103 = vmatpush1.xpose.msra.mxu0 0.0
  %104 = vmatprep.subr.mxu0 0.0
  %105 = vmatpush1.xpose.msra.mxu0 0.0
  %106 = vmatprep.subr.mxu0 0.0
  %107 = vmatpush1.xpose.msra.mxu0 0.0
  %108 = vmatprep.subr.mxu0 0.0
  %109 = vmatpush1.xpose.msra.mxu0 0.0
  %110 = vmatprep.subr.mxu0 0.0
  %111 = vmatpush1.xpose.msra.mxu0 0.0
  %112 = vmatprep.subr.mxu0 0.0
  %113 = vmatpush1.xpose.msra.mxu0 0.0
  %114 = vmatprep.mubr.f32.mxu0 0.0
  %115 = vmatmul.mubr.f32.gmra.mrb[0].mxu0 %v18
  %v116 = vpop.f32.mrb[0].mxu0
  %v117 = vadd.f32 0.0, %v116
  %v118 = vpop.f32.mrb[0].mxu0
  %119 = vmatprep.mubr.f32.mxu0 0.0
  %120 = vmatmul.mubr.f32.gmra.mrb[0].mxu0 %v19
  %v121 = vpop.f32.mrb[0].mxu0
  %v122 = vadd.f32 0.0, %v121
  %v123 = vpop.f32.mrb[0].mxu0
  %124 = vmatprep.mubr.f32.mxu0 0.0
  %125 = vmatmul.mubr.f32.gmra.mrb[0].mxu0 %v20
  %v126 = vpop.f32.mrb[0].mxu0
  %v127 = vadd.f32 0.0, %v126
  %v128 = vpop.f32.mrb[0].mxu0
  %129 = vmatprep.mubr.f32.mxu0 0.0
  %130 = vmatmul.mubr.f32.gmra.mrb[0].mxu0 %v21
  %v131 = vpop.f32.mrb[0].mxu0
  %v132 = vadd.f32 0.0, %v131
  %v133 = vpop.f32.mrb[0].mxu0
  %134 = vmatprep.mubr.f32.mxu0 0.0
  %135 = vmatmul.mubr.f32.gmra.mrb[0].mxu0 %v22
  %v136 = vpop.f32.mrb[0].mxu0
  %v137 = vadd.f32 0.0, %v136
  %v138 = vpop.f32.mrb[0].mxu0
  %139 = vmatprep.mubr.f32.mxu0 0.0
  %140 = vmatmul.mubr.f32.gmra.mrb[0].mxu0 %v23
  %v141 = vpop.f32.mrb[0].mxu0
  %v142 = vadd.f32 0.0, %v141
  %v143 = vpop.f32.mrb[0].mxu0
  %144 = vmatprep.mubr.f32.mxu0 0.0
  %145 = vmatmul.mubr.f32.gmra.mrb[0].mxu0 %v24
  %v146 = vpop.f32.mrb[0].mxu0
  %v147 = vadd.f32 0.0, %v146
  %v148 = vpop.f32.mrb[0].mxu0
  %149 = vmatprep.mubr.f32.mxu0 0.0
  %150 = vmatmul.mubr.f32.gmra.mrb[0].mxu0 %v25
  %v151 = vpop.f32.mrb[0].mxu0
  %v152 = vadd.f32 0.0, %v151
  %v153 = vpop.f32.mrb[0].mxu0
  %154 = vmatprep.mubr.f32.mxu0 0.0
  %155 = vmatmul.mubr.f32.gmra.mrb[0].mxu0 %v26
  %v156 = vpop.f32.mrb[0].mxu0
  %v157 = vadd.f32 0.0, %v156
  %v158 = vpop.f32.mrb[0].mxu0
  %159 = vmatprep.mubr.f32.mxu0 0.0
  %160 = vmatmul.mubr.f32.gmra.mrb[0].mxu0 %v27
  %v161 = vpop.f32.mrb[0].mxu0
  %v162 = vadd.f32 0.0, %v161
  %v163 = vpop.f32.mrb[0].mxu0
  %164 = vmatprep.mubr.f32.mxu0 0.0
  %165 = vmatmul.mubr.f32.gmra.mrb[0].mxu0 %v28
  %v166 = vpop.f32.mrb[0].mxu0
  %v167 = vadd.f32 0.0, %v166
  %v168 = vpop.f32.mrb[0].mxu0
  %169 = vmatprep.mubr.f32.mxu0 0.0
  %170 = vmatmul.mubr.f32.gmra.mrb[0].mxu0 %v29
  %v171 = vpop.f32.mrb[0].mxu0
  %v172 = vadd.f32 0.0, %v171
  %v173 = vpop.f32.mrb[0].mxu0
  %174 = vmatprep.mubr.f32.mxu0 0.0
  %175 = vmatmul.mubr.f32.gmra.mrb[0].mxu0 %v30
  %v176 = vpop.f32.mrb[0].mxu0
  %v177 = vadd.f32 0.0, %v176
  %v178 = vpop.f32.mrb[0].mxu0
  %179 = vmatprep.mubr.f32.mxu0 0.0
  %180 = vmatmul.mubr.f32.gmra.mrb[0].mxu0 %v31
  %v181 = vpop.f32.mrb[0].mxu0
  %v182 = vadd.f32 0.0, %v181
  %v183 = vpop.f32.mrb[0].mxu0
  %184 = vmatprep.mubr.f32.mxu0 0.0
  %185 = vmatmul.mubr.f32.gmra.mrb[0].mxu0 %v32
  %v186 = vpop.f32.mrb[0].mxu0
  %v187 = vadd.f32 0.0, %v186
  %v188 = vpop.f32.mrb[0].mxu0
  %189 = vmatprep.mubr.f32.mxu0 0.0
  %190 = vmatmul.mubr.f32.gmra.mrb[0].mxu0 %v33
  %v191 = vpop.f32.mrb[0].mxu0
  %v192 = vadd.f32 0.0, %v191
  %v193 = vpop.f32.mrb[0].mxu0
  %194 = vdwg.mxu0
  %v195 = vmax.f32 %v117, 0.0
  %v196 = vmax.f32 %v122, 0.0
  %v197 = vmax.f32 %v127, 0.0
  %v198 = vmax.f32 %v132, 0.0
  %v199 = vmax.f32 %v137, 0.0
  %v200 = vmax.f32 %v142, 0.0
  %v201 = vmax.f32 %v147, 0.0
  %v202 = vmax.f32 %v152, 0.0
  %v203 = vmax.f32 %v157, 0.0
  %v204 = vmax.f32 %v162, 0.0
  %v205 = vmax.f32 %v167, 0.0
  %v206 = vmax.f32 %v172, 0.0
  %v207 = vmax.f32 %v177, 0.0
  %v208 = vmax.f32 %v182, 0.0
  %v209 = vmax.f32 %v187, 0.0
  %v210 = vmax.f32 %v192, 0.0
  %v211 = vld [vmem:[%s2] sm:$0xff]
  %212 = vmatprep.subr.mxu0 0.0
  %213 = vmatpush1.msra.mxu0 %v195
  %214 = vmatprep.subr.mxu0 0.0
  %215 = vmatpush1.msra.mxu0 %v196
  %216 = vmatprep.subr.mxu0 0.0
  %217 = vmatpush1.msra.mxu0 %v197
  %218 = vmatprep.subr.mxu0 0.0
  %219 = vmatpush1.msra.mxu0 %v198
  %220 = vmatprep.subr.mxu0 0.0
  %221 = vmatpush1.msra.mxu0 %v199
  %222 = vmatprep.subr.mxu0 0.0
  %223 = vmatpush1.msra.mxu0 %v200
  %224 = vmatprep.subr.mxu0 0.0
  %225 = vmatpush1.msra.mxu0 %v201
  %226 = vmatprep.subr.mxu0 0.0
  %227 = vmatpush1.msra.mxu0 %v202
  %228 = vmatprep.subr.mxu0 0.0
  %229 = vmatpush1.msra.mxu0 %v203
  %230 = vmatprep.subr.mxu0 0.0
  %231 = vmatpush1.msra.mxu0 %v204
  %232 = vmatprep.subr.mxu0 0.0
  %233 = vmatpush1.msra.mxu0 %v205
  %234 = vmatprep.subr.mxu0 0.0
  %235 = vmatpush1.msra.mxu0 %v206
  %236 = vmatprep.subr.mxu0 0.0
  %237 = vmatpush1.msra.mxu0 %v207
  %238 = vmatprep.subr.mxu0 0.0
  %239 = vmatpush1.msra.mxu0 %v208
  %240 = vmatprep.subr.mxu0 0.0
  %241 = vmatpush1.msra.mxu0 %v209
  %242 = vmatprep.subr.mxu0 0.0
  %243 = vmatpush1.msra.mxu0 %v210
  %244 = vmatprep.subr.mxu0 0.0
  %245 = vmatpush1.msra.mxu0 0.0
  %246 = vmatprep.subr.mxu0 0.0
  %247 = vmatpush1.msra.mxu0 0.0
  %248 = vmatprep.subr.mxu0 0.0
  %249 = vmatpush1.msra.mxu0 0.0
  %250 = vmatprep.subr.mxu0 0.0
  %251 = vmatpush1.msra.mxu0 0.0
  %252 = vmatprep.subr.mxu0 0.0
  %253 = vmatpush1.msra.mxu0 0.0
  %254 = vmatprep.subr.mxu0 0.0
  %255 = vmatpush1.msra.mxu0 0.0
  %256 = vmatprep.subr.mxu0 0.0
  %257 = vmatpush1.msra.mxu0 0.0
  %258 = vmatprep.subr.mxu0 0.0
  %259 = vmatpush1.msra.mxu0 0.0
  %260 = vmatprep.subr.mxu0 0.0
  %261 = vmatpush1.msra.mxu0 0.0
  %262 = vmatprep.subr.mxu0 0.0
  %263 = vmatpush1.msra.mxu0 0.0
  %264 = vmatprep.subr.mxu0 0.0
  %265 = vmatpush1.msra.mxu0 0.0
  %266 = vmatprep.subr.mxu0 0.0
  %267 = vmatpush1.msra.mxu0 0.0
  %268 = vmatprep.subr.mxu0 0.0
  %269 = vmatpush1.msra.mxu0 0.0
  %270 = vmatprep.subr.mxu0 0.0
  %271 = vmatpush1.msra.mxu0 0.0
  %272 = vmatprep.subr.mxu0 0.0
  %273 = vmatpush1.msra.mxu0 0.0
  %274 = vmatprep.subr.mxu0 0.0
  %275 = vmatpush1.msra.mxu0 0.0
  %276 = vmatprep.mubr.f32.mxu0 0.0
  %277 = vmatmul.mubr.f32.gmra.mrb[0].mxu0 %v211
  %v278 = vpop.f32.mrb[0].mxu0
  %v279 = vadd.f32 0.0, %v278
  %v280 = vpop.f32.mrb[0].mxu0
  %281 = vdwg.mxu0
  %s282 = sld [smem:[#allocation2]]
  %v283 = vstv %s282
  %v284 = vadd.f32 %v279, %v283
  %v285 = vxor.u32 %v284, 2147483648
  %v286 = vmul.f32 %v285, 1.442695
  %v287 = vpow.pop %v286
  %v288 = vadd.f32 %v287, 1.0
  %v289 = vrcp.pop %v288
  %v290 = vmul.f32 1.0, %v289
  %291 = vst [vmem:[%s4] sm:$0x1] %v290
  // Predicated region
  $region18: #{feedforward_apply.1} parent=0 // pred_check
    _
  $region19: #{feedforward_apply.1} parent=0 // pred_check_branch
    %293 = sbr.rel (0) target = $region21
  $region20: #{feedforward_apply.1} parent=0 // pred_region
    _
  $region21: #{feedforward_apply.1} parent=0 // pred_fallthru
    _
  // Predicated region
  $region22: #{feedforward_apply.1} parent=0 // pred_check
    _
  $region23: #{feedforward_apply.1} parent=0 // pred_check_branch
    %295 = sbr.rel (0) target = $region25
  $region24: #{feedforward_apply.1} parent=0 // pred_region
    _
  $region25: #{feedforward_apply.1} parent=0 // pred_fallthru
    _

</llo_original>
